<compile_context>
chip_gen: v5e
topology: v5e:2x2
jax: 0.10.0
libtpu: 0.0.40
codegen_flags: <defaults>
</compile_context>

<pallas_src>
import functools

import jax
import jax.numpy as jnp
from jax.experimental import pallas as pl
from jax.experimental.pallas import tpu as pltpu


LANE = 128
_TR_CAP = 4096                 # row-tile cap: 2 MiB f32 fake block per step
_SMALL_BYTES = 512 * 1024      # single-step fast path threshold


def _mse_small_kernel(fake_ref, real_ref, out_ref):
    """Whole problem in one step: out = sum over all groups of (fake - real)^2."""
    diff = fake_ref[...].astype(jnp.float32) - real_ref[...].astype(jnp.float32)
    out_ref[0, 0] = jnp.sum(diff * diff)


def _make_tiled_kernel(groups, nt_per_core, rows_total, tr):
    ragged = (rows_total % tr) != 0

    def kernel(fake_ref, real_ref, out_ref, acc_ref):
        r = pl.program_id(1)   # row-tile index within this core's share
        g = pl.program_id(2)   # group index (innermost -> real block reused)

        @pl.when(jnp.logical_and(r == 0, g == 0))
        def _():
            acc_ref[...] = jnp.zeros_like(acc_ref)

        diff = fake_ref[...].astype(jnp.float32) - real_ref[...].astype(jnp.float32)
        sq = diff * diff                                   # (tr, 128), VPU only

        if ragged:
            # Only the globally-last row tile has garbage rows past R; the
            # compare+select is cheap VPU filler and compiled only when needed.
            p = pl.program_id(0)
            tile_start = (p * nt_per_core + r) * tr
            row_ids = jax.lax.broadcasted_iota(jnp.int32, (tr, LANE), 0) + tile_start
            sq = jnp.where(row_ids < rows_total, sq, 0.0)

        # Fold the (tr, 128) tile into a single (8, 128) accumulator vreg.
        # The leading-axis sum is plain vreg-vreg VALU adds (no XLU), and the
        # accumulator costs one vld + one vst per step instead of one per vreg.
        acc_ref[...] += sq.reshape(tr // 8, 8, LANE).sum(axis=0)

        @pl.when(jnp.logical_and(r == nt_per_core - 1, g == groups - 1))
        def _():
            out_ref[0, 0] = jnp.sum(acc_ref[...])          # tiny cross-lane reduce

    return kernel


def _choose_row_tile(rows, cap):
    """Row-tile size: multiple of 8, <= cap, avoiding a ragged tail when possible
    and preferring an even tile count (dual-TC row split). Caller ensures rows >= 8."""
    cap = max(8, (cap // 8) * 8)
    if rows <= cap:
        # Single tile if rows is 8-aligned; otherwise largest 8-aligned tile <= rows
        # (standard partial last block, handled by the ragged mask).
        return rows if rows % 8 == 0 else max(8, (rows // 8) * 8)
    best = None
    for tr in range(cap, max(8, cap // 4) - 1, -8):
        if rows % tr == 0:
            if (rows // tr) % 2 == 0:
                return tr                  # exact tiling, even tile count
            if best is None:
                best = tr                  # exact tiling, odd tile count
    return best if best is not None else cap   # ragged tail fallback


@functools.partial(
    jax.jit,
    static_argnames=("mode", "group_num", "row_tile_cap", "small_bytes"))
def mse_loss_pallas(fake_imgs, real_img, mode="normal", group_num=8,
                    row_tile_cap=_TR_CAP, small_bytes=_SMALL_BYTES):
    """fake_imgs: [G, N, C, H, W] (stacked fake images), real_img: [N, C, H, W].
       Returns scalar float32 loss matching nn.MSELoss (mean reduction) weighting.
    """
    # TODO(synk): only mode='normal' (default, uniform 1/G weights) is implemented;
    # the 'id*' / 'id_variance*' modes take different input structures (chained
    # MSE between consecutive fakes, latent KLD) and are out of scope here.
    del mode

    G = fake_imgs.shape[0]
    assert G == group_num
    M = int(real_img.size)                      # elements per image
    itemsize = jnp.dtype(fake_imgs.dtype).itemsize

    fake_flat = fake_imgs.reshape(G, M)
    real_flat = real_img.reshape(M)

    if M % LANE != 0:
        # Rare for NCHW image sizes; the zero tail contributes exactly 0 to the SSE.
        pad = LANE - (M % LANE)
        fake_flat = jnp.pad(fake_flat, ((0, 0), (0, pad)))
        real_flat = jnp.pad(real_flat, ((0, pad),))
    R = fake_flat.shape[1] // LANE

    fake3 = fake_flat.reshape(G, R, LANE)       # free contiguous reshape
    total_bytes = (G + 1) * R * LANE * itemsize

    cost = pl.CostEstimate(
        flops=3 * G * M,                        # sub + mul + add per element
        transcendentals=0,
        bytes_accessed=(G + 1) * M * itemsize + 4,
    )

    if total_bytes <= small_bytes or R < 8:
        # ---- small-input path: one grid step over the whole slab ----
        real3 = real_flat.reshape(1, R, LANE)
        sse = pl.pallas_call(
            _mse_small_kernel,
            out_shape=jax.ShapeDtypeStruct((1, 1), jnp.float32),
            grid_spec=pltpu.PrefetchScalarGridSpec(
                num_scalar_prefetch=0,
                grid=(1,),
                in_specs=[
                    pl.BlockSpec((G, R, LANE), lambda i: (0, 0, 0)),
                    pl.BlockSpec((1, R, LANE), lambda i: (0, 0, 0)),
                ],
                out_specs=pl.BlockSpec((1, 1), lambda i: (0, 0),
                                       memory_space=pltpu.SMEM),
            ),
            compiler_params=pltpu.CompilerParams(
                dimension_semantics=("arbitrary",)),
            cost_estimate=cost,
        )(fake3, real3)
        total_sse = sse[0, 0]
    else:
        # ---- tiled streaming-reduction path ----
        real2 = real_flat.reshape(R, LANE)

        tr = _choose_row_tile(R, row_tile_cap)
        nt = -(-R // tr)                        # ceil-div, python int
        P = 2 if (nt % 2 == 0 and nt >= 2) else 1   # dual-TC split along rows
        nt_pc = nt // P

        kernel = _make_tiled_kernel(G, nt_pc, R, tr)

        block_bytes = tr * LANE * itemsize
        # Double-buffered fake + real (4 blocks) + intermediates + slack;
        # 32 MiB is within every part's physical VMEM (v7x: 64 MiB) and lifts
        # v5e's 16 MiB scoped default.
        vmem_limit = int(min(32 << 20, max(16 << 20, 6 * block_bytes + (6 << 20))))

        out = pl.pallas_call(
            kernel,
            out_shape=jax.ShapeDtypeStruct((P, 1), jnp.float32),
            grid_spec=pltpu.PrefetchScalarGridSpec(
                num_scalar_prefetch=0,
                grid=(P, nt_pc, G),
                in_specs=[
                    # fake: one group's row tile per step; leading group dim squeezed.
                    pl.BlockSpec((pl.Squeezed(), tr, LANE),
                                 lambda p, r, g, nt_pc=nt_pc: (g, p * nt_pc + r, 0)),
                    # real: block index independent of g -> reused (no re-DMA)
                    # across the inner group loop; each row tile read exactly once.
                    pl.BlockSpec((tr, LANE),
                                 lambda p, r, g, nt_pc=nt_pc: (p * nt_pc + r, 0)),
                ],
                out_specs=pl.BlockSpec((1, 1), lambda p, r, g: (p, 0),
                                       memory_space=pltpu.SMEM),
                scratch_shapes=[pltpu.VMEM((8, LANE), jnp.float32)],
            ),
            compiler_params=pltpu.CompilerParams(
                dimension_semantics=("parallel", "arbitrary", "arbitrary"),
                vmem_limit_bytes=vmem_limit),
            cost_estimate=cost,
        )(fake3, real2)
        total_sse = jnp.sum(out)

    # mode='normal' weights are uniform 1/G; each per-group MSE is SSE/M.
    return total_sse * jnp.float32(1.0 / (group_num * M))


def mse_loss_reference(fake_imgs, real_img, group_num=8):
    w = 1.0 / group_num
    loss = 0.0
    for i in range(group_num):
        loss += w * jnp.mean((fake_imgs[i] - real_img) ** 2)
    return jnp.float32(loss)


if __name__ == "__main__":
    key = jax.random.PRNGKey(0)
    k1, k2, k3, k4, k5, k6 = jax.random.split(key, 6)

    G = 8

    def check(fake, real, **kw):
        got = jax.block_until_ready(
            mse_loss_pallas(fake, real, mode="normal", group_num=G, **kw))
        ref = mse_loss_reference(fake, real, group_num=G)
        assert jnp.allclose(got, ref, rtol=1e-5, atol=1e-6), (got, ref, kw)

    # 1) Small single-step path (toy NCHW shapes, matches the module's usage).
    fake_s = jax.random.normal(k1, (G, 2, 4, 16, 16), dtype=jnp.float32)
    real_s = jax.random.normal(k2, (2, 4, 16, 16), dtype=jnp.float32)
    check(fake_s, real_s)

    # 2) Same data forced through the tiled path with a tiny row-tile cap:
    #    exercises the (P=2, row-tile, group) grid and the (8,128) accumulator.
    check(fake_s, real_s, small_bytes=0, row_tile_cap=8)

    # 3) Non-multiple-of-128 element count (lane pad) + ragged last row tile.
    fake_r = jax.random.normal(k3, (G, 1, 3, 10, 43), dtype=jnp.float32)
    real_r = jax.random.normal(k4, (1, 3, 10, 43), dtype=jnp.float32)
    check(fake_r, real_r)                       # small path
    check(fake_r, real_r, small_bytes=0)        # tiled path with row mask

    # 4) Larger image: naturally takes the tiled streaming path.
    fake_b = jax.random.normal(k5, (G, 2, 4, 128, 64), dtype=jnp.float32)
    real_b = jax.random.normal(k6, (2, 4, 128, 64), dtype=jnp.float32)
    check(fake_b, real_b)

    print("KERNEL_OK")
</pallas_src>

<mosaic_0001>
module attributes {stable_mosaic.version = 11 : i64} {
  func.func @_mse_small_kernel(%arg0: i32, %arg1: memref<8x16x128xf32, #tpu.memory_space<vmem>>, %arg2: memref<1x16x128xf32, #tpu.memory_space<vmem>>, %arg3: memref<1x1xf32, #tpu.memory_space<smem>>) attributes {dimension_semantics = [#tpu.dimension_semantics<arbitrary>], iteration_bounds = array<i64: 1>, scalar_prefetch = 0 : i64, scratch_operands = 0 : i64, tpu.core_type = #tpu.core_type<tc>, window_params = [{pipeline_mode = #tpu.pipeline_mode<synchronous>, transform_indices = @transform_0, window_bounds = array<i64: 8, 16, 128>}, {pipeline_mode = #tpu.pipeline_mode<synchronous>, transform_indices = @transform_1, window_bounds = array<i64: 1, 16, 128>}, {transform_indices = @transform_2, window_bounds = array<i64: 1, 1>}]} {
    %c0 = arith.constant 0 : index
    %c0_0 = arith.constant 0 : index
    %c0_1 = arith.constant 0 : index
    %0 = vector.load %arg1[%c0, %c0_0, %c0_1] : memref<8x16x128xf32, #tpu.memory_space<vmem>>, vector<8x16x128xf32>
    %c0_2 = arith.constant 0 : index
    %c0_3 = arith.constant 0 : index
    %c0_4 = arith.constant 0 : index
    %1 = vector.load %arg2[%c0_2, %c0_3, %c0_4] : memref<1x16x128xf32, #tpu.memory_space<vmem>>, vector<1x16x128xf32>
    %2 = vector.broadcast %1 : vector<1x16x128xf32> to vector<8x16x128xf32>
    %3 = arith.subf %0, %2 : vector<8x16x128xf32>
    %4 = arith.mulf %3, %3 : vector<8x16x128xf32>
    %5 = vector.shape_cast %4 : vector<8x16x128xf32> to vector<1x8x16x128xf32>
    %cst = arith.constant dense<0.000000e+00> : vector<1xf32>
    %6 = vector.multi_reduction <add>, %5, %cst [1, 2, 3] : vector<1x8x16x128xf32> to vector<1xf32>
    %7 = vector.shape_cast %6 : vector<1xf32> to vector<1x1x1x1xf32>
    %8 = vector.extract %7[0, 0, 0, 0] : f32 from vector<1x1x1x1xf32>
    %c0_5 = arith.constant 0 : index
    %c0_6 = arith.constant 0 : index
    %9 = memref.load %arg3[%c0_5, %c0_6] : memref<1x1xf32, #tpu.memory_space<smem>>
    memref.store %8, %arg3[%c0_5, %c0_6] : memref<1x1xf32, #tpu.memory_space<smem>>
    return
  }
  func.func @transform_0(%arg0: i32) -> (i32, i32, i32) {
    %c0_i32 = arith.constant 0 : i32
    %c0_i32_0 = arith.constant 0 : i32
    %c0_i32_1 = arith.constant 0 : i32
    %c0_i32_2 = arith.constant 0 : i32
    return %c0_i32, %c0_i32_0, %c0_i32_1 : i32, i32, i32
  }
  func.func @transform_1(%arg0: i32) -> (i32, i32, i32) {
    %c0_i32 = arith.constant 0 : i32
    %c0_i32_0 = arith.constant 0 : i32
    %c0_i32_1 = arith.constant 0 : i32
    %c0_i32_2 = arith.constant 0 : i32
    return %c0_i32, %c0_i32_0, %c0_i32_1 : i32, i32, i32
  }
  func.func @transform_2(%arg0: i32) -> (i32, i32) {
    %c0_i32 = arith.constant 0 : i32
    %c0_i32_0 = arith.constant 0 : i32
    %c0_i32_1 = arith.constant 0 : i32
    return %c0_i32, %c0_i32_0 : i32, i32
  }
}

</mosaic_0001>

<llo_original>
// kernel: mse_loss_pallas.1
$region0: #{mse_loss_pallas.1}
  #allocation0 [shape = 'u32[]', space=smem, size = 0x4, offset = 0x4, fixed_abs, tag = 'smem constant byte address 0x4 - core index']
  #allocation1 [shape = 'u32[72,128]{1,0:T(1,128)}', space=vmem, size = 0x9000, scoped, tag = 'internal scratch']
  %s0 = inlined_call_operand.vmem [shape: f32[8,16,128], index: 0, kind: input, shape index: {}]
  %s1 = inlined_call_operand.vmem [shape: f32[1,16,128], index: 1, kind: input, shape index: {}]
  %s2 = inlined_call_operand.hbm [shape: f32[1,1], index: 2, kind: output, shape index: {}]
  %s3 = sld [smem:[#allocation0]]
  $region18: #{mse_loss_pallas.1} parent=0
    _
  %s5 = ssub.s32 1, %s3
  %s6 = scalar_select 0, %s5, %s3
  $region1: #{mse_loss_pallas.1} parent=0
    #allocation2 [shape = 'u8[512]{0}', space=smem, size = 0x200, scoped, tag = 'output window, operand 0, single buffered']
    #allocation3 [shape = 's32[1]{0}', space=sflag, size = 0x4, scoped, tag = 'scoped memory for mse_loss_pallas.1']
    %7 = vsyncpa [#allocation3], 0
    // Predicated region
    $region2: #{mse_loss_pallas.1} parent=1 // pred_check
      _
    $region3: #{mse_loss_pallas.1} parent=1 // pred_check_branch
      %9 = sbr.rel (0) target = $region5
    $region4: #{mse_loss_pallas.1} parent=1 // pred_region
      _
    $region5: #{mse_loss_pallas.1} parent=1 // pred_fallthru
      _
    // Predicated region
    $region6: #{mse_loss_pallas.1} parent=1 // pred_check
      _
    $region7: #{mse_loss_pallas.1} parent=1 // pred_check_branch
      %11 = sbr.rel (0) target = $region9
    $region8: #{mse_loss_pallas.1} parent=1 // pred_region
      _
    $region9: #{mse_loss_pallas.1} parent=1 // pred_fallthru
      _
    %v12 = vld [vmem:[%s0] sm:$0xff]
    %v13 = vld [vmem:[%s0 + $0x8] sm:$0xff]
    %v14 = vld [vmem:[%s0 + $0x10] sm:$0xff]
    %v15 = vld [vmem:[%s0 + $0x18] sm:$0xff]
    %v16 = vld [vmem:[%s0 + $0x20] sm:$0xff]
    %v17 = vld [vmem:[%s0 + $0x28] sm:$0xff]
    %v18 = vld [vmem:[%s0 + $0x30] sm:$0xff]
    %v19 = vld [vmem:[%s0 + $0x38] sm:$0xff]
    %v20 = vld [vmem:[%s0 + $0x40] sm:$0xff]
    %v21 = vld [vmem:[%s0 + $0x48] sm:$0xff]
    %v22 = vld [vmem:[%s0 + $0x50] sm:$0xff]
    %v23 = vld [vmem:[%s0 + $0x58] sm:$0xff]
    %v24 = vld [vmem:[%s0 + $0x60] sm:$0xff]
    %v25 = vld [vmem:[%s0 + $0x68] sm:$0xff]
    %v26 = vld [vmem:[%s0 + $0x70] sm:$0xff]
    %v27 = vld [vmem:[%s0 + $0x78] sm:$0xff]
    %v28 = vld [vmem:[%s1] sm:$0xff]
    %v29 = vld [vmem:[%s1 + $0x8] sm:$0xff]
    %v30 = vsub.f32 %v12, %v28
    %v31 = vsub.f32 %v13, %v29
    %v32 = vsub.f32 %v14, %v28
    %v33 = vsub.f32 %v15, %v29
    %v34 = vsub.f32 %v16, %v28
    %v35 = vsub.f32 %v17, %v29
    %v36 = vsub.f32 %v18, %v28
    %v37 = vsub.f32 %v19, %v29
    %v38 = vsub.f32 %v20, %v28
    %v39 = vsub.f32 %v21, %v29
    %v40 = vsub.f32 %v22, %v28
    %v41 = vsub.f32 %v23, %v29
    %v42 = vsub.f32 %v24, %v28
    %v43 = vsub.f32 %v25, %v29
    %v44 = vsub.f32 %v26, %v28
    %v45 = vsub.f32 %v27, %v29
    %v46 = vmul.f32 %v30, %v30
    %v47 = vmul.f32 %v31, %v31
    %v48 = vmul.f32 %v32, %v32
    %v49 = vmul.f32 %v33, %v33
    %v50 = vmul.f32 %v34, %v34
    %v51 = vmul.f32 %v35, %v35
    %v52 = vmul.f32 %v36, %v36
    %v53 = vmul.f32 %v37, %v37
    %v54 = vmul.f32 %v38, %v38
    %v55 = vmul.f32 %v39, %v39
    %v56 = vmul.f32 %v40, %v40
    %v57 = vmul.f32 %v41, %v41
    %v58 = vmul.f32 %v42, %v42
    %v59 = vmul.f32 %v43, %v43
    %v60 = vmul.f32 %v44, %v44
    %v61 = vmul.f32 %v45, %v45
    %v62 = vadd.f32 %v46, %v47
    %v63 = vadd.f32 %v62, %v48
    %v64 = vadd.f32 %v63, %v49
    %v65 = vadd.f32 %v64, %v50
    %v66 = vadd.f32 %v65, %v51
    %v67 = vadd.f32 %v66, %v52
    %v68 = vadd.f32 %v67, %v53
    %v69 = vadd.f32 %v68, %v54
    %v70 = vadd.f32 %v69, %v55
    %v71 = vadd.f32 %v70, %v56
    %v72 = vadd.f32 %v71, %v57
    %v73 = vadd.f32 %v72, %v58
    %v74 = vadd.f32 %v73, %v59
    %v75 = vadd.f32 %v74, %v60
    %v76 = vadd.f32 %v75, %v61
    %77 = vadd.xlane.f32.xlu0 %v76
    %v78 = vpop.xlane.xlu0 %77
    %v79 = vrot.slane %v78, 4
    %v80 = vadd.f32 %v78, %v79
    %v81 = vrot.slane %v80, 2
    %v82 = vadd.f32 %v80, %v81
    %v83 = vrot.slane %v82, 1
    %v84 = vadd.f32 %v82, %v83
    %s85 = vtos %v84
    %s86 = scalar_lea.smem [#allocation2], 0
    %87 = sst [smem:[%s86]] %s85
    // Predicated region
    $region10: #{mse_loss_pallas.1} parent=1 // pred_check
      _
    $region11: #{mse_loss_pallas.1} parent=1 // pred_check_branch
      %89 = sbr.rel (0) target = $region13
    $region12: #{mse_loss_pallas.1} parent=1 // pred_region
      %91 = vsyncadd [#allocation3], 0
      %s93 = sshll.u32 %s2, 4
      %s94 = int_to_ptr.hbm [resolvable:$true] %s93
      %96 = dma.smem_to_hbm [#allocation2], 16, %s94, [#allocation3]
    $region13: #{mse_loss_pallas.1} parent=1 // pred_fallthru
      _
    // Predicated region
    $region14: #{mse_loss_pallas.1} parent=1 // pred_check
      _
    $region15: #{mse_loss_pallas.1} parent=1 // pred_check_branch
      %98 = sbr.rel (0) target = $region17
    $region16: #{mse_loss_pallas.1} parent=1 // pred_region
      %100 = dma.done [#allocation3], 16
    $region17: #{mse_loss_pallas.1} parent=1 // pred_fallthru
      _
    %101 = sfence
    %102 = vsyncpa [#allocation3], 1

</llo_original>
